<compile_context>
chip_gen: v7x
topology: tpu7x:2x2x1
jax: 0.10.0
libtpu: 0.0.40
codegen_flags: <defaults>
</compile_context>

<pallas_src>
import functools

import jax
import jax.numpy as jnp
from jax.experimental import pallas as pl
from jax.experimental.pallas import tpu as pltpu

_LANE = 128


def _vmem_capacity_bytes():
    # Trace-time hardware query; fall back to the smallest per-core VMEM (v7x: 64 MiB).
    try:
        return int(pltpu.get_tpu_info().vmem_capacity_bytes)
    except Exception:
        return 64 * 1024 * 1024


# ----------------------------------------------------------------------------
# Pallas kernel: complex channel mixing for one (batch element, mode block).
#   x_ref : (2, 1, Cin,  TM) f32   real/imag stacked on the leading axis, modes on lanes
#   w_ref : (2, Cin, Cout, TM) f32
#   o_ref : (2, 1, Cout, TM) f32
#
#   out_r[o,m] = sum_i xr[i,m]*wr[i,o,m] - xi[i,m]*wi[i,o,m]
#   out_i[o,m] = sum_i xr[i,m]*wi[i,o,m] + xi[i,m]*wr[i,o,m]
# ----------------------------------------------------------------------------
def _spectral_mix_kernel(x_ref, w_ref, o_ref):
    cin, tm = x_ref.shape[2], x_ref.shape[3]
    cout = w_ref.shape[2]

    # Cout sub-tile sized so (acc_r, acc_i) together stay within ~16-32 f32 vregs
    # (oc * tm ~= 8192 elements), oc a multiple of 8 for sublane alignment.
    oc = min(cout, max(8, ((8192 // tm) // 8) * 8))

    for s in range(0, cout, oc):              # static unroll over Cout sub-tiles
        sz = min(oc, cout - s)
        acc_r = jnp.zeros((sz, tm), jnp.float32)
        acc_i = jnp.zeros((sz, tm), jnp.float32)
        for i in range(cin):                  # static unroll over the contraction
            # One sublane-broadcast per x row, hoisted and reused by two multiplies.
            # TODO(synk): a stride-0 pl.ds load could express this broadcast as a
            # single vld; kept as broadcast_to for lowering robustness.
            xr = jnp.broadcast_to(x_ref[0, 0, i:i + 1, :], (sz, tm))
            xi = jnp.broadcast_to(x_ref[1, 0, i:i + 1, :], (sz, tm))
            wr = w_ref[0, i, s:s + sz, :]
            wi = w_ref[1, i, s:s + sz, :]
            acc_r = acc_r + (xr * wr - xi * wi)
            acc_i = acc_i + (xr * wi + xi * wr)
        # Each output sub-tile is stored exactly once (in-register accumulation).
        o_ref[0, 0, s:s + sz, :] = acc_r
        o_ref[1, 0, s:s + sz, :] = acc_i


def _mix_modes(x_pack, w_pack):
    """x_pack (2,B,Cin,Mp), w_pack (2,Cin,Cout,Mp) -> (2,B,Cout,Mp), all f32.

    Mp is already padded to a multiple of 128 (done once at weight-pack time;
    the activation padding in the forward pass is kept in sync)."""
    _, B, Cin, Mp = x_pack.shape
    Cout = w_pack.shape[2]
    assert Mp % _LANE == 0 and w_pack.shape[3] == Mp

    cap = _vmem_capacity_bytes()
    tile_budget = cap // 4                                    # double-buffered I/O tiles
    vmem_limit = min(int(cap * 3 // 4), 128 * 1024 * 1024)

    # Bytes consumed per lane of the mode axis across all double-buffered tiles.
    bytes_per_lane = 2 * 4 * 2 * (Cin + Cin * Cout + Cout)
    tm_cap = max(_LANE, (tile_budget // bytes_per_lane) // _LANE * _LANE)

    # TM must be a multiple of 128 that divides Mp.  Prefer >= 4 mode blocks
    # (pipeline overlap + v7x megacore sharding) subject to the VMEM cap.
    k = Mp // _LANE
    dcap = max(1, tm_cap // _LANE)
    feasible = [d for d in range(1, k + 1) if k % d == 0 and d <= dcap]
    big = [d for d in feasible if k // d >= 4]
    d = max(big) if big else 1
    TM = _LANE * d
    n_blocks = k // d

    # B innermost: the weight block index is constant across it, so the largest
    # tensor is DMA'd only once per mode block and stays resident in VMEM.
    grid = (n_blocks, B)

    return pl.pallas_call(
        _spectral_mix_kernel,
        grid=grid,
        in_specs=[
            pl.BlockSpec((2, 1, Cin, TM), lambda m, b: (0, b, 0, m)),
            pl.BlockSpec((2, Cin, Cout, TM), lambda m, b: (0, 0, 0, m)),
        ],
        out_specs=pl.BlockSpec((2, 1, Cout, TM), lambda m, b: (0, b, 0, m)),
        out_shape=jax.ShapeDtypeStruct((2, B, Cout, Mp), jnp.float32),
        compiler_params=pltpu.CompilerParams(
            # Both axes are embarrassingly parallel; lets megacore chips shard them.
            dimension_semantics=("parallel", "parallel"),
            vmem_limit_bytes=vmem_limit,
        ),
    )(x_pack, w_pack)


# ----------------------------------------------------------------------------
# Weight packing -- hoisted out of the forward pass (do once per layer).
# (Cin, Cout, m1, m2) complex x2  ->  (2, Cin, Cout, Mp) float32,
# where Mp = round_up(2*m1*m2, 128) (zero-padded -> padded modes contribute 0).
# ----------------------------------------------------------------------------
def pack_spectral_weights(weights1, weights2):
    Cin, Cout, m1, m2 = weights1.shape
    M = 2 * m1 * m2
    Mp = ((M + _LANE - 1) // _LANE) * _LANE
    w = jnp.concatenate(
        [weights1.reshape(Cin, Cout, m1 * m2),
         weights2.reshape(Cin, Cout, m1 * m2)],
        axis=-1,
    )  # (Cin, Cout, M)  low block then high block
    w_pack = jnp.stack([jnp.real(w), jnp.imag(w)], axis=0).astype(jnp.float32)
    if Mp != M:
        w_pack = jnp.pad(w_pack, ((0, 0), (0, 0), (0, 0), (0, Mp - M)))
    return w_pack


# ----------------------------------------------------------------------------
# SpectralConv2d forward (matches the PyTorch module semantics).
# ----------------------------------------------------------------------------
@functools.partial(jax.jit, static_argnames=("modes1", "modes2"))
def spectral_conv2d(x, w_pack, *, modes1, modes2):
    """
    x       : (B, Cin, H, W) float32/float16/bfloat16 (NCHW, like the PyTorch module)
    w_pack  : (2, Cin, Cout, Mp) float32 from pack_spectral_weights
    returns : (B, Cout, H, W), same float dtype as x
    """
    orig_dtype = x.dtype
    if x.dtype == jnp.float16 or x.dtype == jnp.bfloat16:
        x = x.astype(jnp.float32)

    B, Cin, H, W = x.shape
    Cout = w_pack.shape[2]
    Mp = w_pack.shape[3]
    Mh = modes1 * modes2
    M = 2 * Mh

    # TODO(synk): rfft2 / irfft2 have no Pallas TPU equivalent; computed in plain JAX.
    x_ft = jnp.fft.rfft2(x)                       # (B, Cin, H, W//2+1) complex64
    Wf = x_ft.shape[-1]

    # Gather retained modes; layout is already (B, Cin, m1, m2), so only reshapes
    # are needed to put modes on the last (lane) axis.  Pad to the same Mp as the
    # weights so the kernel's last dim is lane-dense and padded lanes are 0*0.
    x_lo = x_ft[:, :, :modes1, :modes2].reshape(B, Cin, Mh)
    x_hi = x_ft[:, :, H - modes1:, :modes2].reshape(B, Cin, Mh)
    xm = jnp.concatenate([x_lo, x_hi], axis=-1)                 # (B, Cin, M)
    x_pack = jnp.stack([jnp.real(xm), jnp.imag(xm)], axis=0)    # (2, B, Cin, M)
    x_pack = x_pack.astype(jnp.float32)
    if Mp != M:
        x_pack = jnp.pad(x_pack, ((0, 0), (0, 0), (0, 0), (0, Mp - M)))

    out_pack = _mix_modes(x_pack, w_pack)                       # (2, B, Cout, Mp)
    out_c = jax.lax.complex(out_pack[0, ..., :M], out_pack[1, ..., :M])

    out_lo = out_c[..., :Mh].reshape(B, Cout, modes1, modes2)
    out_hi = out_c[..., Mh:].reshape(B, Cout, modes1, modes2)

    # Scatter into the zero-initialized spectrum.  If H < 2*modes1 the low/high
    # regions overlap and the high-row write wins -- same as PyTorch.
    out_ft = jnp.zeros((B, Cout, H, Wf), dtype=jnp.complex64)
    out_ft = out_ft.at[:, :, :modes1, :modes2].set(out_lo)
    out_ft = out_ft.at[:, :, H - modes1:, :modes2].set(out_hi)

    x_out = jnp.fft.irfft2(out_ft, s=(H, W))       # (B, Cout, H, W) float32
    return x_out.astype(orig_dtype)


# Pure-JAX reference (mirrors the torch.einsum path) used to validate the kernel.
def _reference(x, w1, w2, modes1, modes2):
    B, Cin, H, W = x.shape
    Cout = w1.shape[1]
    x_ft = jnp.fft.rfft2(x)
    out_ft = jnp.zeros((B, Cout, H, x_ft.shape[-1]), dtype=jnp.complex64)
    lo = jnp.einsum("bixy,ioxy->boxy", x_ft[:, :, :modes1, :modes2], w1)
    hi = jnp.einsum("bixy,ioxy->boxy", x_ft[:, :, -modes1:, :modes2], w2)
    out_ft = out_ft.at[:, :, :modes1, :modes2].set(lo)
    out_ft = out_ft.at[:, :, -modes1:, :modes2].set(hi)
    return jnp.fft.irfft2(out_ft, s=(H, W))


if __name__ == "__main__":
    # Small deterministic example, consistent with the module's forward.
    B, Cin, Cout, H, W = 2, 4, 4, 16, 16
    modes1, modes2 = 4, 4

    key = jax.random.PRNGKey(0)
    kx, kw1r, kw1i, kw2r, kw2i = jax.random.split(key, 5)

    x = jax.random.normal(kx, (B, Cin, H, W), dtype=jnp.float32)

    # Matches: scale * torch.rand(Cin, Cout, m1, m2, dtype=cfloat)
    scale = 1.0 / (Cin * Cout)
    wshape = (Cin, Cout, modes1, modes2)
    weights1 = (scale * (
        jax.random.uniform(kw1r, wshape, jnp.float32)
        + 1j * jax.random.uniform(kw1i, wshape, jnp.float32)
    )).astype(jnp.complex64)
    weights2 = (scale * (
        jax.random.uniform(kw2r, wshape, jnp.float32)
        + 1j * jax.random.uniform(kw2i, wshape, jnp.float32)
    )).astype(jnp.complex64)

    # Weight repack + lane padding hoisted out of the forward pass (once per layer).
    w_pack = jax.block_until_ready(pack_spectral_weights(weights1, weights2))

    y = spectral_conv2d(x, w_pack, modes1=modes1, modes2=modes2)
    y = jax.block_until_ready(y)

    y_ref = jax.block_until_ready(_reference(x, weights1, weights2, modes1, modes2))
    assert y.shape == (B, Cout, H, W) and y.dtype == jnp.float32
    assert jnp.allclose(y, y_ref, atol=1e-4, rtol=1e-4), "mismatch vs reference"

    print("KERNEL_OK")
</pallas_src>

<mosaic_0001>
module attributes {stable_mosaic.version = 11 : i64} {
  func.func @_spectral_mix_kernel(%arg0: i32, %arg1: i32, %arg2: memref<2x1x4x128xf32, #tpu.memory_space<vmem>>, %arg3: memref<2x4x4x128xf32, #tpu.memory_space<vmem>>, %arg4: memref<2x1x4x128xf32, #tpu.memory_space<vmem>>) attributes {dimension_semantics = [#tpu.dimension_semantics<parallel>, #tpu.dimension_semantics<parallel>], iteration_bounds = array<i64: 1, 2>, scalar_prefetch = 0 : i64, scratch_operands = 0 : i64, tpu.core_type = #tpu.core_type<tc>, window_params = [{transform_indices = @transform_0, window_bounds = array<i64: 2, 1, 4, 128>}, {transform_indices = @transform_1, window_bounds = array<i64: 2, 4, 4, 128>}, {transform_indices = @transform_2, window_bounds = array<i64: 2, 1, 4, 128>}]} {
    %cst = arith.constant 0.000000e+00 : f32
    %0 = vector.broadcast %cst : f32 to vector<4x128xf32>
    %cst_0 = arith.constant 0.000000e+00 : f32
    %1 = vector.broadcast %cst_0 : f32 to vector<4x128xf32>
    %c0 = arith.constant 0 : index
    %c0_1 = arith.constant 0 : index
    %c0_2 = arith.constant 0 : index
    %c0_3 = arith.constant 0 : index
    %2 = vector.load %arg2[%c0, %c0_1, %c0_2, %c0_3] : memref<2x1x4x128xf32, #tpu.memory_space<vmem>>, vector<1x1x1x128xf32>
    %3 = vector.shape_cast %2 : vector<1x1x1x128xf32> to vector<1x128xf32>
    %4 = vector.shape_cast %3 : vector<1x128xf32> to vector<1x128xf32>
    %5 = vector.broadcast %4 : vector<1x128xf32> to vector<4x128xf32>
    %c1 = arith.constant 1 : index
    %c0_4 = arith.constant 0 : index
    %c0_5 = arith.constant 0 : index
    %c0_6 = arith.constant 0 : index
    %6 = vector.load %arg2[%c1, %c0_4, %c0_5, %c0_6] : memref<2x1x4x128xf32, #tpu.memory_space<vmem>>, vector<1x1x1x128xf32>
    %7 = vector.shape_cast %6 : vector<1x1x1x128xf32> to vector<1x128xf32>
    %8 = vector.shape_cast %7 : vector<1x128xf32> to vector<1x128xf32>
    %9 = vector.broadcast %8 : vector<1x128xf32> to vector<4x128xf32>
    %c0_7 = arith.constant 0 : index
    %c0_8 = arith.constant 0 : index
    %c0_9 = arith.constant 0 : index
    %c0_10 = arith.constant 0 : index
    %10 = vector.load %arg3[%c0_7, %c0_8, %c0_9, %c0_10] : memref<2x4x4x128xf32, #tpu.memory_space<vmem>>, vector<1x1x4x128xf32>
    %11 = vector.shape_cast %10 : vector<1x1x4x128xf32> to vector<4x128xf32>
    %c1_11 = arith.constant 1 : index
    %c0_12 = arith.constant 0 : index
    %c0_13 = arith.constant 0 : index
    %c0_14 = arith.constant 0 : index
    %12 = vector.load %arg3[%c1_11, %c0_12, %c0_13, %c0_14] : memref<2x4x4x128xf32, #tpu.memory_space<vmem>>, vector<1x1x4x128xf32>
    %13 = vector.shape_cast %12 : vector<1x1x4x128xf32> to vector<4x128xf32>
    %14 = arith.mulf %5, %11 : vector<4x128xf32>
    %15 = arith.mulf %9, %13 : vector<4x128xf32>
    %16 = arith.subf %14, %15 : vector<4x128xf32>
    %17 = arith.addf %0, %16 : vector<4x128xf32>
    %18 = arith.mulf %5, %13 : vector<4x128xf32>
    %19 = arith.mulf %9, %11 : vector<4x128xf32>
    %20 = arith.addf %18, %19 : vector<4x128xf32>
    %21 = arith.addf %1, %20 : vector<4x128xf32>
    %c0_15 = arith.constant 0 : index
    %c0_16 = arith.constant 0 : index
    %c1_17 = arith.constant 1 : index
    %c0_18 = arith.constant 0 : index
    %22 = vector.load %arg2[%c0_15, %c0_16, %c1_17, %c0_18] : memref<2x1x4x128xf32, #tpu.memory_space<vmem>>, vector<1x1x1x128xf32>
    %23 = vector.shape_cast %22 : vector<1x1x1x128xf32> to vector<1x128xf32>
    %24 = vector.shape_cast %23 : vector<1x128xf32> to vector<1x128xf32>
    %25 = vector.broadcast %24 : vector<1x128xf32> to vector<4x128xf32>
    %c1_19 = arith.constant 1 : index
    %c0_20 = arith.constant 0 : index
    %c1_21 = arith.constant 1 : index
    %c0_22 = arith.constant 0 : index
    %26 = vector.load %arg2[%c1_19, %c0_20, %c1_21, %c0_22] : memref<2x1x4x128xf32, #tpu.memory_space<vmem>>, vector<1x1x1x128xf32>
    %27 = vector.shape_cast %26 : vector<1x1x1x128xf32> to vector<1x128xf32>
    %28 = vector.shape_cast %27 : vector<1x128xf32> to vector<1x128xf32>
    %29 = vector.broadcast %28 : vector<1x128xf32> to vector<4x128xf32>
    %c0_23 = arith.constant 0 : index
    %c1_24 = arith.constant 1 : index
    %c0_25 = arith.constant 0 : index
    %c0_26 = arith.constant 0 : index
    %30 = vector.load %arg3[%c0_23, %c1_24, %c0_25, %c0_26] : memref<2x4x4x128xf32, #tpu.memory_space<vmem>>, vector<1x1x4x128xf32>
    %31 = vector.shape_cast %30 : vector<1x1x4x128xf32> to vector<4x128xf32>
    %c1_27 = arith.constant 1 : index
    %c1_28 = arith.constant 1 : index
    %c0_29 = arith.constant 0 : index
    %c0_30 = arith.constant 0 : index
    %32 = vector.load %arg3[%c1_27, %c1_28, %c0_29, %c0_30] : memref<2x4x4x128xf32, #tpu.memory_space<vmem>>, vector<1x1x4x128xf32>
    %33 = vector.shape_cast %32 : vector<1x1x4x128xf32> to vector<4x128xf32>
    %34 = arith.mulf %25, %31 : vector<4x128xf32>
    %35 = arith.mulf %29, %33 : vector<4x128xf32>
    %36 = arith.subf %34, %35 : vector<4x128xf32>
    %37 = arith.addf %17, %36 : vector<4x128xf32>
    %38 = arith.mulf %25, %33 : vector<4x128xf32>
    %39 = arith.mulf %29, %31 : vector<4x128xf32>
    %40 = arith.addf %38, %39 : vector<4x128xf32>
    %41 = arith.addf %21, %40 : vector<4x128xf32>
    %c0_31 = arith.constant 0 : index
    %c0_32 = arith.constant 0 : index
    %c2 = arith.constant 2 : index
    %c0_33 = arith.constant 0 : index
    %42 = vector.load %arg2[%c0_31, %c0_32, %c2, %c0_33] : memref<2x1x4x128xf32, #tpu.memory_space<vmem>>, vector<1x1x1x128xf32>
    %43 = vector.shape_cast %42 : vector<1x1x1x128xf32> to vector<1x128xf32>
    %44 = vector.shape_cast %43 : vector<1x128xf32> to vector<1x128xf32>
    %45 = vector.broadcast %44 : vector<1x128xf32> to vector<4x128xf32>
    %c1_34 = arith.constant 1 : index
    %c0_35 = arith.constant 0 : index
    %c2_36 = arith.constant 2 : index
    %c0_37 = arith.constant 0 : index
    %46 = vector.load %arg2[%c1_34, %c0_35, %c2_36, %c0_37] : memref<2x1x4x128xf32, #tpu.memory_space<vmem>>, vector<1x1x1x128xf32>
    %47 = vector.shape_cast %46 : vector<1x1x1x128xf32> to vector<1x128xf32>
    %48 = vector.shape_cast %47 : vector<1x128xf32> to vector<1x128xf32>
    %49 = vector.broadcast %48 : vector<1x128xf32> to vector<4x128xf32>
    %c0_38 = arith.constant 0 : index
    %c2_39 = arith.constant 2 : index
    %c0_40 = arith.constant 0 : index
    %c0_41 = arith.constant 0 : index
    %50 = vector.load %arg3[%c0_38, %c2_39, %c0_40, %c0_41] : memref<2x4x4x128xf32, #tpu.memory_space<vmem>>, vector<1x1x4x128xf32>
    %51 = vector.shape_cast %50 : vector<1x1x4x128xf32> to vector<4x128xf32>
    %c1_42 = arith.constant 1 : index
    %c2_43 = arith.constant 2 : index
    %c0_44 = arith.constant 0 : index
    %c0_45 = arith.constant 0 : index
    %52 = vector.load %arg3[%c1_42, %c2_43, %c0_44, %c0_45] : memref<2x4x4x128xf32, #tpu.memory_space<vmem>>, vector<1x1x4x128xf32>
    %53 = vector.shape_cast %52 : vector<1x1x4x128xf32> to vector<4x128xf32>
    %54 = arith.mulf %45, %51 : vector<4x128xf32>
    %55 = arith.mulf %49, %53 : vector<4x128xf32>
    %56 = arith.subf %54, %55 : vector<4x128xf32>
    %57 = arith.addf %37, %56 : vector<4x128xf32>
    %58 = arith.mulf %45, %53 : vector<4x128xf32>
    %59 = arith.mulf %49, %51 : vector<4x128xf32>
    %60 = arith.addf %58, %59 : vector<4x128xf32>
    %61 = arith.addf %41, %60 : vector<4x128xf32>
    %c0_46 = arith.constant 0 : index
    %c0_47 = arith.constant 0 : index
    %c3 = arith.constant 3 : index
    %c0_48 = arith.constant 0 : index
    %62 = vector.load %arg2[%c0_46, %c0_47, %c3, %c0_48] : memref<2x1x4x128xf32, #tpu.memory_space<vmem>>, vector<1x1x1x128xf32>
    %63 = vector.shape_cast %62 : vector<1x1x1x128xf32> to vector<1x128xf32>
    %64 = vector.shape_cast %63 : vector<1x128xf32> to vector<1x128xf32>
    %65 = vector.broadcast %64 : vector<1x128xf32> to vector<4x128xf32>
    %c1_49 = arith.constant 1 : index
    %c0_50 = arith.constant 0 : index
    %c3_51 = arith.constant 3 : index
    %c0_52 = arith.constant 0 : index
    %66 = vector.load %arg2[%c1_49, %c0_50, %c3_51, %c0_52] : memref<2x1x4x128xf32, #tpu.memory_space<vmem>>, vector<1x1x1x128xf32>
    %67 = vector.shape_cast %66 : vector<1x1x1x128xf32> to vector<1x128xf32>
    %68 = vector.shape_cast %67 : vector<1x128xf32> to vector<1x128xf32>
    %69 = vector.broadcast %68 : vector<1x128xf32> to vector<4x128xf32>
    %c0_53 = arith.constant 0 : index
    %c3_54 = arith.constant 3 : index
    %c0_55 = arith.constant 0 : index
    %c0_56 = arith.constant 0 : index
    %70 = vector.load %arg3[%c0_53, %c3_54, %c0_55, %c0_56] : memref<2x4x4x128xf32, #tpu.memory_space<vmem>>, vector<1x1x4x128xf32>
    %71 = vector.shape_cast %70 : vector<1x1x4x128xf32> to vector<4x128xf32>
    %c1_57 = arith.constant 1 : index
    %c3_58 = arith.constant 3 : index
    %c0_59 = arith.constant 0 : index
    %c0_60 = arith.constant 0 : index
    %72 = vector.load %arg3[%c1_57, %c3_58, %c0_59, %c0_60] : memref<2x4x4x128xf32, #tpu.memory_space<vmem>>, vector<1x1x4x128xf32>
    %73 = vector.shape_cast %72 : vector<1x1x4x128xf32> to vector<4x128xf32>
    %74 = arith.mulf %65, %71 : vector<4x128xf32>
    %75 = arith.mulf %69, %73 : vector<4x128xf32>
    %76 = arith.subf %74, %75 : vector<4x128xf32>
    %77 = arith.addf %57, %76 : vector<4x128xf32>
    %78 = arith.mulf %65, %73 : vector<4x128xf32>
    %79 = arith.mulf %69, %71 : vector<4x128xf32>
    %80 = arith.addf %78, %79 : vector<4x128xf32>
    %81 = arith.addf %61, %80 : vector<4x128xf32>
    %c0_61 = arith.constant 0 : index
    %c0_62 = arith.constant 0 : index
    %c0_63 = arith.constant 0 : index
    %c0_64 = arith.constant 0 : index
    %82 = vector.load %arg4[%c0_61, %c0_62, %c0_63, %c0_64] : memref<2x1x4x128xf32, #tpu.memory_space<vmem>>, vector<1x1x4x128xf32>
    %83 = vector.shape_cast %82 : vector<1x1x4x128xf32> to vector<4x128xf32>
    %84 = vector.shape_cast %77 : vector<4x128xf32> to vector<1x1x4x128xf32>
    tpu.vector_store %arg4[%c0_61, %c0_62, %c0_63, %c0_64], %84 {strides = array<i32>} : memref<2x1x4x128xf32, #tpu.memory_space<vmem>>, vector<1x1x4x128xf32>,
    %c1_65 = arith.constant 1 : index
    %c0_66 = arith.constant 0 : index
    %c0_67 = arith.constant 0 : index
    %c0_68 = arith.constant 0 : index
    %85 = vector.load %arg4[%c1_65, %c0_66, %c0_67, %c0_68] : memref<2x1x4x128xf32, #tpu.memory_space<vmem>>, vector<1x1x4x128xf32>
    %86 = vector.shape_cast %85 : vector<1x1x4x128xf32> to vector<4x128xf32>
    %87 = vector.shape_cast %81 : vector<4x128xf32> to vector<1x1x4x128xf32>
    tpu.vector_store %arg4[%c1_65, %c0_66, %c0_67, %c0_68], %87 {strides = array<i32>} : memref<2x1x4x128xf32, #tpu.memory_space<vmem>>, vector<1x1x4x128xf32>,
    return
  }
  func.func @transform_0(%arg0: i32, %arg1: i32) -> (i32, i32, i32, i32) {
    %c0_i32 = arith.constant 0 : i32
    %c0_i32_0 = arith.constant 0 : i32
    %c0_i32_1 = arith.constant 0 : i32
    return %c0_i32, %arg1, %c0_i32_0, %arg0 : i32, i32, i32, i32
  }
  func.func @transform_1(%arg0: i32, %arg1: i32) -> (i32, i32, i32, i32) {
    %c0_i32 = arith.constant 0 : i32
    %c0_i32_0 = arith.constant 0 : i32
    %c0_i32_1 = arith.constant 0 : i32
    %c0_i32_2 = arith.constant 0 : i32
    return %c0_i32, %c0_i32_0, %c0_i32_1, %arg0 : i32, i32, i32, i32
  }
  func.func @transform_2(%arg0: i32, %arg1: i32) -> (i32, i32, i32, i32) {
    %c0_i32 = arith.constant 0 : i32
    %c0_i32_0 = arith.constant 0 : i32
    %c0_i32_1 = arith.constant 0 : i32
    return %c0_i32, %arg1, %c0_i32_0, %arg0 : i32, i32, i32, i32
  }
}

</mosaic_0001>

<llo_original>
// kernel: spectral_conv2d.1
$region0: #{spectral_conv2d.1}
  #allocation0 [shape = 'u32[]', space=smem, size = 0x4, offset = 0x4, fixed_abs, tag = 'smem constant byte address 0x4 - core index']
  #allocation1 [shape = 'u32[144,128]{1,0:T(1,128)}', space=vmem, size = 0x12000, scoped, tag = 'internal scratch']
  %s0 = inlined_call_operand.vmem [shape: f32[2,2,4,128], index: 0, kind: input, shape index: {}]
  %s1 = inlined_call_operand.vmem [shape: f32[2,4,4,128], index: 1, kind: input, shape index: {}]
  %s2 = inlined_call_operand.vmem [shape: f32[2,2,4,128], index: 2, kind: output, shape index: {}]
  %s3 = sld [smem:[#allocation0]]
  $region119: #{spectral_conv2d.1} parent=0
    _
  %s5 = ssub.s32 1, %s3
  %s6 = scalar_select 0, %s5, %s3
  $region1: #{spectral_conv2d.1} parent=0
    #allocation2 [shape = 'u8[8192]{0}', space=vmem, size = 0x2000, scoped, tag = 'input window, operand 0']
    #allocation3 [shape = 'u8[8192]{0}', space=vmem, size = 0x2000, scoped, tag = 'output window, operand 0']
    loop: start=0, step=1, limit=4
    $region2: #{spectral_conv2d.1} parent=1 // loop_pre_header
      _
    $region3: #{spectral_conv2d.1} parent=1 // loop_header
      %s8 = sphi 0, %s12
      %p9 = scmp.ge.s32.totalorder %s8, 4
      %s15 = sphi 0, %s27
      %s16 = sphi 0, %s23
      %s17 = sphi 0, %s15
      %s18 = sphi 0, %s16
      %s19 = sphi 0, %s17
      %s20 = sphi 0, %s18
      %s32 = sphi 0, %s34
      %s35 = sphi 0, %s32
      %s36 = sphi 0, %s35
      %s52 = sphi 0, %s36
      %s58 = sphi 0, %s60
      %s61 = sphi 0, %s58
      %s62 = sphi 0, %s61
      %s78 = sphi 0, %s62
      %s86 = sphi 0, %s88
      %s89 = sphi 0, %s86
      %s90 = sphi 0, %s89
      %s106 = sphi 0, %s90
    $region4: #{spectral_conv2d.1} parent=1 // loop_header_branch
      %11 = sbr.rel (%p9) target = $region8
    $region5: #{spectral_conv2d.1} parent=1 // loop_body
      %s13 = ssub.s32 %s8, 1
      %s14 = ssub.s32 %s8, 2
      %s21 = sadd.s32 1, %s16
      %p22 = scmp.ge.s32.totalorder %s21, 2
      %s23 = scalar_select %p22, 0, %s21
      %s24 = sadd.s32 1, %s15
      %s25 = scalar_select %p22, %s24, %s15
      %p26 = scmp.ge.s32.totalorder %s25, 1
      %s27 = scalar_select %p26, 0, %s25
      %s28 = ssub.s32 %s16, %s23
      %s29 = ssub.s32 %s15, %s27
      %s30 = sor.u32 %s28, %s29
      %p31 = scmp.eq.s32.totalorder %s30, 0
      %s33 = sadd.s32 %s32, 1
      %s34 = scalar_select %p31, %s32, %s33
      %p37 = pneg %p31
      %p38 = scmp.eq.s32.totalorder %s8, 1
      %p39 = por %p37, %p38
      %p40 = scmp.ne.s32.totalorder %s32, %s35
      %p41 = scmp.eq.s32.totalorder %s8, 0
      %p42 = por %p40, %p41
      %p43 = scmp.ne.s32.totalorder %s32, %s35
      %p44 = scmp.eq.s32.totalorder %s13, 1
      %p45 = por %p43, %p44
      %p46 = scmp.ne.s32.totalorder %s35, %s36
      %p47 = scmp.eq.s32.totalorder %s13, 0
      %p48 = por %p46, %p47
      %p49 = scmp.ne.s32.totalorder %s35, %s36
      %p50 = scmp.eq.s32.totalorder %s14, 1
      %p51 = por %p49, %p50
      %p53 = scmp.ne.s32.totalorder %s36, %s52
      %p54 = scmp.eq.s32.totalorder %s14, 0
      %p55 = por %p53, %p54
      %s56 = ssub.s32 %s15, %s27
      %p57 = scmp.eq.s32.totalorder %s56, 0
      %s59 = sadd.s32 %s58, 1
      %s60 = scalar_select %p57, %s58, %s59
      %p63 = pneg %p57
      %p64 = scmp.eq.s32.totalorder %s8, 1
      %p65 = por %p63, %p64
      %p66 = scmp.ne.s32.totalorder %s58, %s61
      %p67 = scmp.eq.s32.totalorder %s8, 0
      %p68 = por %p66, %p67
      %p69 = scmp.ne.s32.totalorder %s58, %s61
      %p70 = scmp.eq.s32.totalorder %s13, 1
      %p71 = por %p69, %p70
      %p72 = scmp.ne.s32.totalorder %s61, %s62
      %p73 = scmp.eq.s32.totalorder %s13, 0
      %p74 = por %p72, %p73
      %p75 = scmp.ne.s32.totalorder %s61, %s62
      %p76 = scmp.eq.s32.totalorder %s14, 1
      %p77 = por %p75, %p76
      %p79 = scmp.ne.s32.totalorder %s62, %s78
      %p80 = scmp.eq.s32.totalorder %s14, 0
      %p81 = por %p79, %p80
      %s82 = ssub.s32 %s16, %s23
      %s83 = ssub.s32 %s15, %s27
      %s84 = sor.u32 %s82, %s83
      %p85 = scmp.eq.s32.totalorder %s84, 0
      %s87 = sadd.s32 %s86, 1
      %s88 = scalar_select %p85, %s86, %s87
      %p91 = pneg %p85
      %p92 = scmp.eq.s32.totalorder %s8, 1
      %p93 = por %p91, %p92
      %p94 = scmp.ne.s32.totalorder %s86, %s89
      %p95 = scmp.eq.s32.totalorder %s8, 0
      %p96 = por %p94, %p95
      %p97 = scmp.ne.s32.totalorder %s86, %s89
      %p98 = scmp.eq.s32.totalorder %s13, 1
      %p99 = por %p97, %p98
      %p100 = scmp.ne.s32.totalorder %s89, %s90
      %p101 = scmp.eq.s32.totalorder %s13, 0
      %p102 = por %p100, %p101
      %p103 = scmp.ne.s32.totalorder %s89, %s90
      %p104 = scmp.eq.s32.totalorder %s14, 1
      %p105 = por %p103, %p104
      %p107 = scmp.ne.s32.totalorder %s90, %s106
      %p108 = scmp.eq.s32.totalorder %s14, 0
      %p109 = por %p107, %p108
      %p110 = scmp.le.s32.totalorder 1, %s8
      %p111 = scmp.lt.s32.totalorder %s8, 3
      %p112 = pnand %p110, %p111
      %p113 = pneg %p112
      // Predicated region
      $region9: #{spectral_conv2d.1} parent=5 // pred_check
        _
      $region10: #{spectral_conv2d.1} parent=5 // pred_check_branch
        %115 = sbr.rel (%p112) target = $region12
      $region11: #{spectral_conv2d.1} parent=5 // pred_region
        %s116 = ssub.s32 %s8, 1
        // Predicated region
        $region13: #{spectral_conv2d.1} parent=11 // pred_check
          %p117 = pneg %p74
        $region14: #{spectral_conv2d.1} parent=11 // pred_check_branch
          %119 = sbr.rel (%p117) target = $region16
        $region15: #{spectral_conv2d.1} parent=11 // pred_region
          %p120 = scmp.lt.s32.totalorder %s17, 0
          %s121 = scalar_select %p120, %s17, 0
          %s122 = smul.addr %s121, 4
          %s123 = scalar_lea.vmem %s1, %s122
        $region16: #{spectral_conv2d.1} parent=11 // pred_fallthru
          _
      $region12: #{spectral_conv2d.1} parent=5 // pred_fallthru
        _
      %p124 = scmp.lt.s32.totalorder %s8, 2
      // Predicated region
      $region17: #{spectral_conv2d.1} parent=5 // pred_check
        %p125 = pneg %p124
      $region18: #{spectral_conv2d.1} parent=5 // pred_check_branch
        %127 = sbr.rel (%p125) target = $region20
      $region19: #{spectral_conv2d.1} parent=5 // pred_region
        // Predicated region
        $region21: #{spectral_conv2d.1} parent=19 // pred_check
          %p128 = pneg %p42
        $region22: #{spectral_conv2d.1} parent=19 // pred_check_branch
          %130 = sbr.rel (%p128) target = $region24
        $region23: #{spectral_conv2d.1} parent=19 // pred_region
          %s131 = sand.u32 %s32, 1
          %s132 = sand.u32 %s32, 1
          %s133 = smul.addr %s132, 8
          %s134 = scalar_lea.vmem [#allocation2], %s133
          %s135 = sadd.s32 %s15, %s16
          %s136 = smul.addr %s135, 4
          %s137 = scalar_lea.vmem %s0, %s136
          // Predicated region
          $region25: #{spectral_conv2d.1} parent=23 // pred_check
            _
          $region26: #{spectral_conv2d.1} parent=23 // pred_check_branch
            %139 = sbr.rel (0) target = $region28
          $region27: #{spectral_conv2d.1} parent=23 // pred_region
            // Predicated region
            $region29: #{spectral_conv2d.1} parent=27 // pred_check
              _
            $region30: #{spectral_conv2d.1} parent=27 // pred_check_branch
              %141 = sbr.rel target = $region32
            $region31: #{spectral_conv2d.1} parent=27 // pred_region
              // Predicated region
              $region44: #{spectral_conv2d.1} parent=31 // pred_check
                _
              $region45: #{spectral_conv2d.1} parent=31 // pred_check_branch
                %158 = sbr.rel (0) target = $region47
              $region46: #{spectral_conv2d.1} parent=31 // pred_region
                loop: start=0, step=1, limit=1
                $region48: #{spectral_conv2d.1} parent=46 // loop_pre_header
                  _
                $region49: #{spectral_conv2d.1} parent=46 // loop_header
                  %s160 = sphi 0, %s164
                  %p161 = scmp.ge.s32.totalorder %s160, 1
                  %s165 = sphi %s137, %s137
                  %s166 = sphi %s134, %s134
                $region50: #{spectral_conv2d.1} parent=46 // loop_header_branch
                  %163 = sbr.rel (%p161) target = $region54
                $region51: #{spectral_conv2d.1} parent=46 // loop_body
                  _
                $region52: #{spectral_conv2d.1} parent=46 // loop_footer
                  %s164 = sadd.s32 1, %s160
                $region53: #{spectral_conv2d.1} parent=46 // loop_footer_branch
                  %159 = sbr.rel target = $region49
                $region54: #{spectral_conv2d.1} parent=46 // loop_exit
                  _
                loop: start=0, step=1, limit=1
                $region55: #{spectral_conv2d.1} parent=46 // loop_pre_header
                  _
                $region56: #{spectral_conv2d.1} parent=46 // loop_header
                  %s169 = sphi 0, %s173
                  %p170 = scmp.ge.s32.totalorder %s169, 1
                  %s174 = sphi %s137, %s137
                  %s175 = sphi %s134, %s134
                $region57: #{spectral_conv2d.1} parent=46 // loop_header_branch
                  %172 = sbr.rel (%p170) target = $region61
                $region58: #{spectral_conv2d.1} parent=46 // loop_body
                  %v176 = vld [vmem:[%s174] sm:$0xf]
                  %177 = vst [vmem:[%s175] sm:$0xf] %v176
                  %v178 = vld [vmem:[%s174 + $0x8] sm:$0xf]
                  %179 = vst [vmem:[%s175 + $0x4] sm:$0xf] %v178
                $region59: #{spectral_conv2d.1} parent=46 // loop_footer
                  %s173 = sadd.s32 1, %s169
                $region60: #{spectral_conv2d.1} parent=46 // loop_footer_branch
                  %168 = sbr.rel target = $region56
                $region61: #{spectral_conv2d.1} parent=46 // loop_exit
                  _
              $region47: #{spectral_conv2d.1} parent=31 // pred_fallthru
                _
            $region32: #{spectral_conv2d.1} parent=27 // pred_fallthru
              _
            // Predicated region
            $region33: #{spectral_conv2d.1} parent=27 // pred_check
              _
            $region34: #{spectral_conv2d.1} parent=27 // pred_check_branch
              %143 = sbr.rel (0) target = $region36
            $region35: #{spectral_conv2d.1} parent=27 // pred_region
              loop: start=0, step=1, limit=1
              $region37: #{spectral_conv2d.1} parent=35 // loop_pre_header
                _
              $region38: #{spectral_conv2d.1} parent=35 // loop_header
                %s146 = sphi 0, %s150
                %p147 = scmp.ge.s32.totalorder %s146, 1
                %s151 = sphi %s137, %s137
                %s152 = sphi %s134, %s134
              $region39: #{spectral_conv2d.1} parent=35 // loop_header_branch
                %149 = sbr.rel (%p147) target = $region43
              $region40: #{spectral_conv2d.1} parent=35 // loop_body
                %v153 = vld [vmem:[%s151] sm:$0xf]
                %154 = vst [vmem:[%s152] sm:$0xf] %v153
                %v155 = vld [vmem:[%s151 + $0x8] sm:$0xf]
                %156 = vst [vmem:[%s152 + $0x4] sm:$0xf] %v155
              $region41: #{spectral_conv2d.1} parent=35 // loop_footer
                %s150 = sadd.s32 1, %s146
              $region42: #{spectral_conv2d.1} parent=35 // loop_footer_branch
                %145 = sbr.rel target = $region38
              $region43: #{spectral_conv2d.1} parent=35 // loop_exit
                _
            $region36: #{spectral_conv2d.1} parent=27 // pred_fallthru
              _
          $region28: #{spectral_conv2d.1} parent=23 // pred_fallthru
            _
          %180 = vnop
        $region24: #{spectral_conv2d.1} parent=19 // pred_fallthru
          _
      $region20: #{spectral_conv2d.1} parent=5 // pred_fallthru
        _
      %p181 = scmp.le.s32.totalorder 1, %s8
      %p182 = scmp.lt.s32.totalorder %s8, 3
      %p183 = pnand %p181, %p182
      %p184 = pneg %p183
      // Predicated region
      $region62: #{spectral_conv2d.1} parent=5 // pred_check
        _
      $region63: #{spectral_conv2d.1} parent=5 // pred_check_branch
        %186 = sbr.rel (%p183) target = $region65
      $region64: #{spectral_conv2d.1} parent=5 // pred_region
        %s187 = ssub.s32 %s8, 1
        %s188 = sand.u32 %s35, 1
        %s189 = sand.u32 %s35, 1
        %s190 = smul.addr %s189, 8
        %s191 = scalar_lea.vmem [#allocation2], %s190
        // Predicated region
        $region66: #{spectral_conv2d.1} parent=64 // pred_check
          %p192 = pneg %p48
        $region67: #{spectral_conv2d.1} parent=64 // pred_check_branch
          %194 = sbr.rel (%p192) target = $region69
        $region68: #{spectral_conv2d.1} parent=64 // pred_region
          _
        $region69: #{spectral_conv2d.1} parent=64 // pred_fallthru
          _
        %s195 = sand.u32 %s35, 1
        %s196 = sand.u32 %s35, 1
        %s197 = smul.addr %s196, 8
        %s198 = scalar_lea.vmem [#allocation2], %s197
        %p199 = pneg %p48
        %p200 = pneg %p45
        %p201 = scmp.lt.s32.totalorder %s17, 0
        %s202 = scalar_select %p201, %s17, 0
        %s203 = smul.addr %s202, 4
        %s204 = scalar_lea.vmem %s1, %s203
        %p205 = pneg %p74
        %p206 = pneg %p71
        %p207 = pneg %p102
        %p208 = pneg %p99
        %s209 = sand.u32 %s89, 1
        %s210 = sand.u32 %s89, 1
        %s211 = smul.addr %s210, 8
        %s212 = scalar_lea.vmem [#allocation3], %s211
        %p213 = scmp.lt.s32.totalorder %s17, 0
        %s214 = scalar_select %p213, %s17, 0
        %s215 = smul.addr %s214, 4
        %s216 = scalar_lea.vmem %s1, %s215
        %v217 = vld [vmem:[%s191] sm:$0x1]
        %v218 = vlaneseq
        %v219 = vshrl.u32 %v218, 7
        %v220 = vsub.s32 0, %v219
        %v221 = vrot.slane %v217, %v220
        %s222 = scalar_lea.vmem %s191, 4 [#allocation2]
        %v223 = vld [vmem:[%s222] sm:$0x1]
        %v224 = vlaneseq
        %v225 = vshrl.u32 %v224, 7
        %v226 = vsub.s32 0, %v225
        %v227 = vrot.slane %v223, %v226
        %v228 = vld [vmem:[%s216] sm:$0xf]
        %s229 = scalar_lea.vmem %s216, 16
        %v230 = vld [vmem:[%s229] sm:$0xf]
        %v231 = vmul.f32 %v221, %v228
        %v232 = vmul.f32 %v227, %v230
        %v233 = vsub.f32 %v231, %v232
        %v234 = vadd.f32 %v233, 0.0
        %v235 = vmul.f32 %v221, %v230
        %v236 = vmul.f32 %v227, %v228
        %v237 = vadd.f32 %v235, %v236
        %v238 = vadd.f32 %v237, 0.0
        %v239 = vld [vmem:[%s191 + $0x1] sm:$0x1]
        %v240 = vlaneseq
        %v241 = vshrl.u32 %v240, 7
        %v242 = vsub.s32 0, %v241
        %v243 = vrot.slane %v239, %v242
        %v244 = vld [vmem:[%s222 + $0x1] sm:$0x1]
        %v245 = vlaneseq
        %v246 = vshrl.u32 %v245, 7
        %v247 = vsub.s32 0, %v246
        %v248 = vrot.slane %v244, %v247
        %s249 = scalar_lea.vmem %s216, 4
        %v250 = vld [vmem:[%s249] sm:$0xf]
        %s251 = scalar_lea.vmem %s216, 20
        %v252 = vld [vmem:[%s251] sm:$0xf]
        %v253 = vmul.f32 %v243, %v250
        %v254 = vmul.f32 %v248, %v252
        %v255 = vsub.f32 %v253, %v254
        %v256 = vadd.f32 %v234, %v255
        %v257 = vmul.f32 %v243, %v252
        %v258 = vmul.f32 %v248, %v250
        %v259 = vadd.f32 %v257, %v258
        %v260 = vadd.f32 %v238, %v259
        %v261 = vld [vmem:[%s191 + $0x2] sm:$0x1]
        %v262 = vlaneseq
        %v263 = vshrl.u32 %v262, 7
        %v264 = vsub.s32 0, %v263
        %v265 = vrot.slane %v261, %v264
        %v266 = vld [vmem:[%s222 + $0x2] sm:$0x1]
        %v267 = vlaneseq
        %v268 = vshrl.u32 %v267, 7
        %v269 = vsub.s32 0, %v268
        %v270 = vrot.slane %v266, %v269
        %s271 = scalar_lea.vmem %s216, 8
        %v272 = vld [vmem:[%s271] sm:$0xf]
        %s273 = scalar_lea.vmem %s216, 24
        %v274 = vld [vmem:[%s273] sm:$0xf]
        %v275 = vmul.f32 %v265, %v272
        %v276 = vmul.f32 %v270, %v274
        %v277 = vsub.f32 %v275, %v276
        %v278 = vadd.f32 %v256, %v277
        %v279 = vmul.f32 %v265, %v274
        %v280 = vmul.f32 %v270, %v272
        %v281 = vadd.f32 %v279, %v280
        %v282 = vadd.f32 %v260, %v281
        %v283 = vld [vmem:[%s191 + $0x3] sm:$0x1]
        %v284 = vlaneseq
        %v285 = vshrl.u32 %v284, 7
        %v286 = vsub.s32 0, %v285
        %v287 = vrot.slane %v283, %v286
        %v288 = vld [vmem:[%s222 + $0x3] sm:$0x1]
        %v289 = vlaneseq
        %v290 = vshrl.u32 %v289, 7
        %v291 = vsub.s32 0, %v290
        %v292 = vrot.slane %v288, %v291
        %s293 = scalar_lea.vmem %s216, 12
        %v294 = vld [vmem:[%s293] sm:$0xf]
        %s295 = scalar_lea.vmem %s216, 28
        %v296 = vld [vmem:[%s295] sm:$0xf]
        %v297 = vmul.f32 %v287, %v294
        %v298 = vmul.f32 %v292, %v296
        %v299 = vsub.f32 %v297, %v298
        %v300 = vadd.f32 %v278, %v299
        %v301 = vmul.f32 %v287, %v296
        %v302 = vmul.f32 %v292, %v294
        %v303 = vadd.f32 %v301, %v302
        %v304 = vadd.f32 %v282, %v303
        %305 = vst [vmem:[%s212] sm:$0xf] %v300
        %s306 = scalar_lea.vmem %s212, 4 [#allocation3]
        %307 = vst [vmem:[%s306] sm:$0xf] %v304
        %s308 = sand.u32 %s89, 1
        %s309 = sand.u32 %s89, 1
        %s310 = smul.addr %s309, 8
        %s311 = scalar_lea.vmem [#allocation3], %s310
        // Predicated region
        $region70: #{spectral_conv2d.1} parent=64 // pred_check
          %p312 = pneg %p99
        $region71: #{spectral_conv2d.1} parent=64 // pred_check_branch
          %314 = sbr.rel (%p312) target = $region73
        $region72: #{spectral_conv2d.1} parent=64 // pred_region
          %s315 = sadd.s32 %s17, %s18
          %s316 = smul.addr %s315, 4
          %s317 = scalar_lea.vmem %s2, %s316
          // Predicated region
          $region74: #{spectral_conv2d.1} parent=72 // pred_check
            _
          $region75: #{spectral_conv2d.1} parent=72 // pred_check_branch
            %319 = sbr.rel (0) target = $region77
          $region76: #{spectral_conv2d.1} parent=72 // pred_region
            // Predicated region
            $region78: #{spectral_conv2d.1} parent=76 // pred_check
              _
            $region79: #{spectral_conv2d.1} parent=76 // pred_check_branch
              %321 = sbr.rel target = $region81
            $region80: #{spectral_conv2d.1} parent=76 // pred_region
              // Predicated region
              $region93: #{spectral_conv2d.1} parent=80 // pred_check
                _
              $region94: #{spectral_conv2d.1} parent=80 // pred_check_branch
                %338 = sbr.rel (0) target = $region96
              $region95: #{spectral_conv2d.1} parent=80 // pred_region
                loop: start=0, step=1, limit=1
                $region97: #{spectral_conv2d.1} parent=95 // loop_pre_header
                  _
                $region98: #{spectral_conv2d.1} parent=95 // loop_header
                  %s340 = sphi 0, %s344
                  %p341 = scmp.ge.s32.totalorder %s340, 1
                  %s345 = sphi %s311, %s311
                  %s346 = sphi %s317, %s317
                $region99: #{spectral_conv2d.1} parent=95 // loop_header_branch
                  %343 = sbr.rel (%p341) target = $region103
                $region100: #{spectral_conv2d.1} parent=95 // loop_body
                  _
                $region101: #{spectral_conv2d.1} parent=95 // loop_footer
                  %s344 = sadd.s32 1, %s340
                $region102: #{spectral_conv2d.1} parent=95 // loop_footer_branch
                  %339 = sbr.rel target = $region98
                $region103: #{spectral_conv2d.1} parent=95 // loop_exit
                  _
                loop: start=0, step=1, limit=1
                $region104: #{spectral_conv2d.1} parent=95 // loop_pre_header
                  _
                $region105: #{spectral_conv2d.1} parent=95 // loop_header
                  %s349 = sphi 0, %s353
                  %p350 = scmp.ge.s32.totalorder %s349, 1
                  %s354 = sphi %s311, %s311
                  %s355 = sphi %s317, %s317
                $region106: #{spectral_conv2d.1} parent=95 // loop_header_branch
                  %352 = sbr.rel (%p350) target = $region110
                $region107: #{spectral_conv2d.1} parent=95 // loop_body
                  %v356 = vld [vmem:[%s354] sm:$0xf]
                  %357 = vst [vmem:[%s355] sm:$0xf] %v356
                  %v358 = vld [vmem:[%s354 + $0x4] sm:$0xf]
                  %359 = vst [vmem:[%s355 + $0x8] sm:$0xf] %v358
                $region108: #{spectral_conv2d.1} parent=95 // loop_footer
                  %s353 = sadd.s32 1, %s349
                $region109: #{spectral_conv2d.1} parent=95 // loop_footer_branch
                  %348 = sbr.rel target = $region105
                $region110: #{spectral_conv2d.1} parent=95 // loop_exit
                  _
              $region96: #{spectral_conv2d.1} parent=80 // pred_fallthru
                _
            $region81: #{spectral_conv2d.1} parent=76 // pred_fallthru
              _
            // Predicated region
            $region82: #{spectral_conv2d.1} parent=76 // pred_check
              _
            $region83: #{spectral_conv2d.1} parent=76 // pred_check_branch
              %323 = sbr.rel (0) target = $region85
            $region84: #{spectral_conv2d.1} parent=76 // pred_region
              loop: start=0, step=1, limit=1
              $region86: #{spectral_conv2d.1} parent=84 // loop_pre_header
                _
              $region87: #{spectral_conv2d.1} parent=84 // loop_header
                %s326 = sphi 0, %s330
                %p327 = scmp.ge.s32.totalorder %s326, 1
                %s331 = sphi %s311, %s311
                %s332 = sphi %s317, %s317
              $region88: #{spectral_conv2d.1} parent=84 // loop_header_branch
                %329 = sbr.rel (%p327) target = $region92
              $region89: #{spectral_conv2d.1} parent=84 // loop_body
                %v333 = vld [vmem:[%s331] sm:$0xf]
                %334 = vst [vmem:[%s332] sm:$0xf] %v333
                %v335 = vld [vmem:[%s331 + $0x4] sm:$0xf]
                %336 = vst [vmem:[%s332 + $0x8] sm:$0xf] %v335
              $region90: #{spectral_conv2d.1} parent=84 // loop_footer
                %s330 = sadd.s32 1, %s326
              $region91: #{spectral_conv2d.1} parent=84 // loop_footer_branch
                %325 = sbr.rel target = $region87
              $region92: #{spectral_conv2d.1} parent=84 // loop_exit
                _
            $region85: #{spectral_conv2d.1} parent=76 // pred_fallthru
              _
          $region77: #{spectral_conv2d.1} parent=72 // pred_fallthru
            _
          %360 = vnop
        $region73: #{spectral_conv2d.1} parent=64 // pred_fallthru
          _
      $region65: #{spectral_conv2d.1} parent=5 // pred_fallthru
        _
      %p361 = scmp.le.s32.totalorder 2, %s8
      // Predicated region
      $region111: #{spectral_conv2d.1} parent=5 // pred_check
        %p362 = pneg %p361
      $region112: #{spectral_conv2d.1} parent=5 // pred_check_branch
        %364 = sbr.rel (%p362) target = $region114
      $region113: #{spectral_conv2d.1} parent=5 // pred_region
        %s365 = ssub.s32 %s8, 2
        // Predicated region
        $region115: #{spectral_conv2d.1} parent=113 // pred_check
          %p366 = pneg %p105
        $region116: #{spectral_conv2d.1} parent=113 // pred_check_branch
          %368 = sbr.rel (%p366) target = $region118
        $region117: #{spectral_conv2d.1} parent=113 // pred_region
          %s369 = sand.u32 %s90, 1
          %s370 = sand.u32 %s90, 1
          %s371 = smul.addr %s370, 8
          %s372 = scalar_lea.vmem [#allocation3], %s371
        $region118: #{spectral_conv2d.1} parent=113 // pred_fallthru
          _
      $region114: #{spectral_conv2d.1} parent=5 // pred_fallthru
        _
    $region6: #{spectral_conv2d.1} parent=1 // loop_footer
      %s12 = sadd.s32 1, %s8
    $region7: #{spectral_conv2d.1} parent=1 // loop_footer_branch
      %7 = sbr.rel target = $region3
    $region8: #{spectral_conv2d.1} parent=1 // loop_exit
      _

// kernel: reverse.1
$region0: #{reverse.1}
  %s0 = inlined_call_operand.vmem [shape: f32[2,4,16,7], index: 0, kind: input, shape index: {}]
  %s1 = inlined_call_operand.vmem [shape: f32[2,4,16,7], index: 1, kind: output, shape index: {}]
  $region1: #{reverse.1} parent=0
    #allocation0 [shape = 'u8[65536]{0}', space=vmem, size = 0x10000, scoped, tag = 'operand span for operand 0']
    #allocation1 [shape = 'u8[32768]{0}', space=vmem, size = 0x8000, scoped, tag = 'operand span for operand 1']
    %s2 = scalar_lea.vmem [#allocation0], 8
    // Predicated region
    $region2: #{reverse.1} parent=1 // pred_check
      _
    $region3: #{reverse.1} parent=1 // pred_check_branch
      %4 = sbr.rel (0) target = $region5
    $region4: #{reverse.1} parent=1 // pred_region
      // Predicated region
      $region6: #{reverse.1} parent=4 // pred_check
        _
      $region7: #{reverse.1} parent=4 // pred_check_branch
        %6 = sbr.rel (0) target = $region9
      $region8: #{reverse.1} parent=4 // pred_region
        // Predicated region
        $region21: #{reverse.1} parent=8 // pred_check
          _
        $region22: #{reverse.1} parent=8 // pred_check_branch
          %35 = sbr.rel (0) target = $region24
        $region23: #{reverse.1} parent=8 // pred_region
          loop: start=0, step=1, limit=1
          $region25: #{reverse.1} parent=23 // loop_pre_header
            _
          $region26: #{reverse.1} parent=23 // loop_header
            %s37 = sphi 0, %s41
            %p38 = scmp.ge.s32.totalorder %s37, 1
            %s42 = sphi %s0, %s0
            %s43 = sphi %s2, %s2
          $region27: #{reverse.1} parent=23 // loop_header_branch
            %40 = sbr.rel (%p38) target = $region31
          $region28: #{reverse.1} parent=23 // loop_body
            %v44 = vld [vmem:[%s42] sm:$0xff]
            %45 = vst [vmem:[%s43] sm:$0xff] %v44
            %v46 = vld [vmem:[%s42 + $0x8] sm:$0xff]
            %47 = vst [vmem:[%s43 + $0x10] sm:$0xff] %v46
            %v48 = vld [vmem:[%s42 + $0x10] sm:$0xff]
            %49 = vst [vmem:[%s43 + $0x20] sm:$0xff] %v48
            %v50 = vld [vmem:[%s42 + $0x18] sm:$0xff]
            %51 = vst [vmem:[%s43 + $0x30] sm:$0xff] %v50
            %v52 = vld [vmem:[%s42 + $0x20] sm:$0xff]
            %53 = vst [vmem:[%s43 + $0x40] sm:$0xff] %v52
            %v54 = vld [vmem:[%s42 + $0x28] sm:$0xff]
            %55 = vst [vmem:[%s43 + $0x50] sm:$0xff] %v54
            %v56 = vld [vmem:[%s42 + $0x30] sm:$0xff]
            %57 = vst [vmem:[%s43 + $0x60] sm:$0xff] %v56
            %v58 = vld [vmem:[%s42 + $0x38] sm:$0xff]
            %59 = vst [vmem:[%s43 + $0x70] sm:$0xff] %v58
          $region29: #{reverse.1} parent=23 // loop_footer
            %s41 = sadd.s32 1, %s37
          $region30: #{reverse.1} parent=23 // loop_footer_branch
            %36 = sbr.rel target = $region26
          $region31: #{reverse.1} parent=23 // loop_exit
            _
        $region24: #{reverse.1} parent=8 // pred_fallthru
          _
        // Predicated region
        $region32: #{reverse.1} parent=8 // pred_check
          _
        $region33: #{reverse.1} parent=8 // pred_check_branch
          %61 = sbr.rel target = $region35
        $region34: #{reverse.1} parent=8 // pred_region
          _
        $region35: #{reverse.1} parent=8 // pred_fallthru
          _
      $region9: #{reverse.1} parent=4 // pred_fallthru
        _
      // Predicated region
      $region10: #{reverse.1} parent=4 // pred_check
        _
      $region11: #{reverse.1} parent=4 // pred_check_branch
        %8 = sbr.rel target = $region13
      $region12: #{reverse.1} parent=4 // pred_region
        loop: start=0, step=1, limit=1
        $region14: #{reverse.1} parent=12 // loop_pre_header
          _
        $region15: #{reverse.1} parent=12 // loop_header
          %s11 = sphi 0, %s15
          %p12 = scmp.ge.s32.totalorder %s11, 1
          %s16 = sphi %s0, %s0
          %s17 = sphi %s2, %s2
        $region16: #{reverse.1} parent=12 // loop_header_branch
          %14 = sbr.rel (%p12) target = $region20
        $region17: #{reverse.1} parent=12 // loop_body
          %v18 = vld [vmem:[%s16] sm:$0xff]
          %19 = vst [vmem:[%s17] sm:$0xff] %v18
          %v20 = vld [vmem:[%s16 + $0x8] sm:$0xff]
          %21 = vst [vmem:[%s17 + $0x10] sm:$0xff] %v20
          %v22 = vld [vmem:[%s16 + $0x10] sm:$0xff]
          %23 = vst [vmem:[%s17 + $0x20] sm:$0xff] %v22
          %v24 = vld [vmem:[%s16 + $0x18] sm:$0xff]
          %25 = vst [vmem:[%s17 + $0x30] sm:$0xff] %v24
          %v26 = vld [vmem:[%s16 + $0x20] sm:$0xff]
          %27 = vst [vmem:[%s17 + $0x40] sm:$0xff] %v26
          %v28 = vld [vmem:[%s16 + $0x28] sm:$0xff]
          %29 = vst [vmem:[%s17 + $0x50] sm:$0xff] %v28
          %v30 = vld [vmem:[%s16 + $0x30] sm:$0xff]
          %31 = vst [vmem:[%s17 + $0x60] sm:$0xff] %v30
          %v32 = vld [vmem:[%s16 + $0x38] sm:$0xff]
          %33 = vst [vmem:[%s17 + $0x70] sm:$0xff] %v32
        $region18: #{reverse.1} parent=12 // loop_footer
          %s15 = sadd.s32 1, %s11
        $region19: #{reverse.1} parent=12 // loop_footer_branch
          %10 = sbr.rel target = $region15
        $region20: #{reverse.1} parent=12 // loop_exit
          _
      $region13: #{reverse.1} parent=4 // pred_fallthru
        _
    $region5: #{reverse.1} parent=1 // pred_fallthru
      _
    %62 = vnop
    %s63 = scalar_lea.vmem [#allocation0], 7
    %v64 = vld [vmem:[%s63] ss:$-1 sm:$0xff]
    %v65 = vrot.slane %v64, 1
    %66 = vst [vmem:[#allocation1] sm:$0xff] %v65
    %s67 = scalar_lea.vmem [#allocation0], 8
    %s68 = scalar_lea.vmem %s67, 7 [#allocation0]
    %v69 = vld [vmem:[%s68] ss:$-1 sm:$0xff]
    %v70 = vrot.slane %v69, 1
    %v71 = vlaneseq
    %v72 = vshrl.u32 %v71, 7
    %vm73 = vcmp.lt.s32.totalorder %v72, 7
    %74 = vst.msk [vmem:[#allocation1] sm:$0xff] %vm73, %v70
    %s75 = scalar_lea.vmem [#allocation1], 8
    %s76 = scalar_lea.vmem [#allocation0], 16
    %s77 = scalar_lea.vmem %s76, 7 [#allocation0]
    %v78 = vld [vmem:[%s77] ss:$-1 sm:$0xff]
    %v79 = vrot.slane %v78, 1
    %80 = vst [vmem:[%s75] sm:$0xff] %v79
    %s81 = scalar_lea.vmem %s76, 8 [#allocation0]
    %s82 = scalar_lea.vmem %s81, 7 [#allocation0]
    %v83 = vld [vmem:[%s82] ss:$-1 sm:$0xff]
    %v84 = vrot.slane %v83, 1
    %v85 = vlaneseq
    %v86 = vshrl.u32 %v85, 7
    %vm87 = vcmp.lt.s32.totalorder %v86, 7
    %88 = vst.msk [vmem:[%s75] sm:$0xff] %vm87, %v84
    %s89 = scalar_lea.vmem [#allocation1], 16
    %s90 = scalar_lea.vmem [#allocation0], 32
    %s91 = scalar_lea.vmem %s90, 7 [#allocation0]
    %v92 = vld [vmem:[%s91] ss:$-1 sm:$0xff]
    %v93 = vrot.slane %v92, 1
    %94 = vst [vmem:[%s89] sm:$0xff] %v93
    %s95 = scalar_lea.vmem %s90, 8 [#allocation0]
    %s96 = scalar_lea.vmem %s95, 7 [#allocation0]
    %v97 = vld [vmem:[%s96] ss:$-1 sm:$0xff]
    %v98 = vrot.slane %v97, 1
    %v99 = vlaneseq
    %v100 = vshrl.u32 %v99, 7
    %vm101 = vcmp.lt.s32.totalorder %v100, 7
    %102 = vst.msk [vmem:[%s89] sm:$0xff] %vm101, %v98
    %s103 = scalar_lea.vmem [#allocation1], 24
    %s104 = scalar_lea.vmem [#allocation0], 48
    %s105 = scalar_lea.vmem %s104, 7 [#allocation0]
    %v106 = vld [vmem:[%s105] ss:$-1 sm:$0xff]
    %v107 = vrot.slane %v106, 1
    %108 = vst [vmem:[%s103] sm:$0xff] %v107
    %s109 = scalar_lea.vmem %s104, 8 [#allocation0]
    %s110 = scalar_lea.vmem %s109, 7 [#allocation0]
    %v111 = vld [vmem:[%s110] ss:$-1 sm:$0xff]
    %v112 = vrot.slane %v111, 1
    %v113 = vlaneseq
    %v114 = vshrl.u32 %v113, 7
    %vm115 = vcmp.lt.s32.totalorder %v114, 7
    %116 = vst.msk [vmem:[%s103] sm:$0xff] %vm115, %v112
    %s117 = scalar_lea.vmem [#allocation1], 32
    %s118 = scalar_lea.vmem [#allocation0], 64
    %s119 = scalar_lea.vmem %s118, 7 [#allocation0]
    %v120 = vld [vmem:[%s119] ss:$-1 sm:$0xff]
    %v121 = vrot.slane %v120, 1
    %122 = vst [vmem:[%s117] sm:$0xff] %v121
    %s123 = scalar_lea.vmem %s118, 8 [#allocation0]
    %s124 = scalar_lea.vmem %s123, 7 [#allocation0]
    %v125 = vld [vmem:[%s124] ss:$-1 sm:$0xff]
    %v126 = vrot.slane %v125, 1
    %v127 = vlaneseq
    %v128 = vshrl.u32 %v127, 7
    %vm129 = vcmp.lt.s32.totalorder %v128, 7
    %130 = vst.msk [vmem:[%s117] sm:$0xff] %vm129, %v126
    %s131 = scalar_lea.vmem [#allocation1], 40
    %s132 = scalar_lea.vmem [#allocation0], 80
    %s133 = scalar_lea.vmem %s132, 7 [#allocation0]
    %v134 = vld [vmem:[%s133] ss:$-1 sm:$0xff]
    %v135 = vrot.slane %v134, 1
    %136 = vst [vmem:[%s131] sm:$0xff] %v135
    %s137 = scalar_lea.vmem %s132, 8 [#allocation0]
    %s138 = scalar_lea.vmem %s137, 7 [#allocation0]
    %v139 = vld [vmem:[%s138] ss:$-1 sm:$0xff]
    %v140 = vrot.slane %v139, 1
    %v141 = vlaneseq
    %v142 = vshrl.u32 %v141, 7
    %vm143 = vcmp.lt.s32.totalorder %v142, 7
    %144 = vst.msk [vmem:[%s131] sm:$0xff] %vm143, %v140
    %s145 = scalar_lea.vmem [#allocation1], 48
    %s146 = scalar_lea.vmem [#allocation0], 96
    %s147 = scalar_lea.vmem %s146, 7 [#allocation0]
    %v148 = vld [vmem:[%s147] ss:$-1 sm:$0xff]
    %v149 = vrot.slane %v148, 1
    %150 = vst [vmem:[%s145] sm:$0xff] %v149
    %s151 = scalar_lea.vmem %s146, 8 [#allocation0]
    %s152 = scalar_lea.vmem %s151, 7 [#allocation0]
    %v153 = vld [vmem:[%s152] ss:$-1 sm:$0xff]
    %v154 = vrot.slane %v153, 1
    %v155 = vlaneseq
    %v156 = vshrl.u32 %v155, 7
    %vm157 = vcmp.lt.s32.totalorder %v156, 7
    %158 = vst.msk [vmem:[%s145] sm:$0xff] %vm157, %v154
    %s159 = scalar_lea.vmem [#allocation1], 56
    %s160 = scalar_lea.vmem [#allocation0], 112
    %s161 = scalar_lea.vmem %s160, 7 [#allocation0]
    %v162 = vld [vmem:[%s161] ss:$-1 sm:$0xff]
    %v163 = vrot.slane %v162, 1
    %164 = vst [vmem:[%s159] sm:$0xff] %v163
    %s165 = scalar_lea.vmem %s160, 8 [#allocation0]
    %s166 = scalar_lea.vmem %s165, 7 [#allocation0]
    %v167 = vld [vmem:[%s166] ss:$-1 sm:$0xff]
    %v168 = vrot.slane %v167, 1
    %v169 = vlaneseq
    %v170 = vshrl.u32 %v169, 7
    %vm171 = vcmp.lt.s32.totalorder %v170, 7
    %172 = vst.msk [vmem:[%s159] sm:$0xff] %vm171, %v168
    // Predicated region
    $region36: #{reverse.1} parent=1 // pred_check
      _
    $region37: #{reverse.1} parent=1 // pred_check_branch
      %174 = sbr.rel (0) target = $region39
    $region38: #{reverse.1} parent=1 // pred_region
      // Predicated region
      $region40: #{reverse.1} parent=38 // pred_check
        _
      $region41: #{reverse.1} parent=38 // pred_check_branch
        %176 = sbr.rel (0) target = $region43
      $region42: #{reverse.1} parent=38 // pred_region
        // Predicated region
        $region55: #{reverse.1} parent=42 // pred_check
          _
        $region56: #{reverse.1} parent=42 // pred_check_branch
          %205 = sbr.rel (0) target = $region58
        $region57: #{reverse.1} parent=42 // pred_region
          loop: start=0, step=1, limit=1
          $region59: #{reverse.1} parent=57 // loop_pre_header
            _
          $region60: #{reverse.1} parent=57 // loop_header
            %s207 = sphi 0, %s211
            %p208 = scmp.ge.s32.totalorder %s207, 1
            %s212 = sphi [#allocation1], [#allocation1]
            %s213 = sphi %s1, %s1
          $region61: #{reverse.1} parent=57 // loop_header_branch
            %210 = sbr.rel (%p208) target = $region65
          $region62: #{reverse.1} parent=57 // loop_body
            %v214 = vld [vmem:[%s212] sm:$0xff]
            %215 = vst [vmem:[%s213] sm:$0xff] %v214
            %v216 = vld [vmem:[%s212 + $0x8] sm:$0xff]
            %217 = vst [vmem:[%s213 + $0x8] sm:$0xff] %v216
            %v218 = vld [vmem:[%s212 + $0x10] sm:$0xff]
            %219 = vst [vmem:[%s213 + $0x10] sm:$0xff] %v218
            %v220 = vld [vmem:[%s212 + $0x18] sm:$0xff]
            %221 = vst [vmem:[%s213 + $0x18] sm:$0xff] %v220
            %v222 = vld [vmem:[%s212 + $0x20] sm:$0xff]
            %223 = vst [vmem:[%s213 + $0x20] sm:$0xff] %v222
            %v224 = vld [vmem:[%s212 + $0x28] sm:$0xff]
            %225 = vst [vmem:[%s213 + $0x28] sm:$0xff] %v224
            %v226 = vld [vmem:[%s212 + $0x30] sm:$0xff]
            %227 = vst [vmem:[%s213 + $0x30] sm:$0xff] %v226
            %v228 = vld [vmem:[%s212 + $0x38] sm:$0xff]
            %229 = vst [vmem:[%s213 + $0x38] sm:$0xff] %v228
          $region63: #{reverse.1} parent=57 // loop_footer
            %s211 = sadd.s32 1, %s207
          $region64: #{reverse.1} parent=57 // loop_footer_branch
            %206 = sbr.rel target = $region60
          $region65: #{reverse.1} parent=57 // loop_exit
            _
        $region58: #{reverse.1} parent=42 // pred_fallthru
          _
        // Predicated region
        $region66: #{reverse.1} parent=42 // pred_check
          _
        $region67: #{reverse.1} parent=42 // pred_check_branch
          %231 = sbr.rel target = $region69
        $region68: #{reverse.1} parent=42 // pred_region
          _
        $region69: #{reverse.1} parent=42 // pred_fallthru
          _
      $region43: #{reverse.1} parent=38 // pred_fallthru
        _
      // Predicated region
      $region44: #{reverse.1} parent=38 // pred_check
        _
      $region45: #{reverse.1} parent=38 // pred_check_branch
        %178 = sbr.rel target = $region47
      $region46: #{reverse.1} parent=38 // pred_region
        loop: start=0, step=1, limit=1
        $region48: #{reverse.1} parent=46 // loop_pre_header
          _
        $region49: #{reverse.1} parent=46 // loop_header
          %s181 = sphi 0, %s185
          %p182 = scmp.ge.s32.totalorder %s181, 1
          %s186 = sphi [#allocation1], [#allocation1]
          %s187 = sphi %s1, %s1
        $region50: #{reverse.1} parent=46 // loop_header_branch
          %184 = sbr.rel (%p182) target = $region54
        $region51: #{reverse.1} parent=46 // loop_body
          %v188 = vld [vmem:[%s186] sm:$0xff]
          %189 = vst [vmem:[%s187] sm:$0xff] %v188
          %v190 = vld [vmem:[%s186 + $0x8] sm:$0xff]
          %191 = vst [vmem:[%s187 + $0x8] sm:$0xff] %v190
          %v192 = vld [vmem:[%s186 + $0x10] sm:$0xff]
          %193 = vst [vmem:[%s187 + $0x10] sm:$0xff] %v192
          %v194 = vld [vmem:[%s186 + $0x18] sm:$0xff]
          %195 = vst [vmem:[%s187 + $0x18] sm:$0xff] %v194
          %v196 = vld [vmem:[%s186 + $0x20] sm:$0xff]
          %197 = vst [vmem:[%s187 + $0x20] sm:$0xff] %v196
          %v198 = vld [vmem:[%s186 + $0x28] sm:$0xff]
          %199 = vst [vmem:[%s187 + $0x28] sm:$0xff] %v198
          %v200 = vld [vmem:[%s186 + $0x30] sm:$0xff]
          %201 = vst [vmem:[%s187 + $0x30] sm:$0xff] %v200
          %v202 = vld [vmem:[%s186 + $0x38] sm:$0xff]
          %203 = vst [vmem:[%s187 + $0x38] sm:$0xff] %v202
        $region52: #{reverse.1} parent=46 // loop_footer
          %s185 = sadd.s32 1, %s181
        $region53: #{reverse.1} parent=46 // loop_footer_branch
          %180 = sbr.rel target = $region49
        $region54: #{reverse.1} parent=46 // loop_exit
          _
      $region47: #{reverse.1} parent=38 // pred_fallthru
        _
    $region39: #{reverse.1} parent=1 // pred_fallthru
      _
    %232 = vnop

</llo_original>
